<compile_context>
chip_gen: v7x
topology: tpu7x:2x2x1
jax: 0.10.0
libtpu: 0.0.40
codegen_flags: <defaults>
</compile_context>

<pallas_src>
import functools
import math

import jax
import jax.numpy as jnp
from jax.experimental import pallas as pl
from jax.experimental.pallas import tpu as pltpu

_LANE = 128
_VMEM_LIMIT_BYTES = 48 * 1024 * 1024
_SMALL_INPUT_BYTES = 256 * 1024  # below this, a fused XLA elementwise op wins


def _prelu_kernel(x_ref, sl_ref, sr_ref, o_ref):
    x = x_ref[...]  # (tb, tc)
    # One select + one multiply; (1, tc) scales broadcast across rows.
    o_ref[...] = x * jnp.where(x > 0, sr_ref[...], sl_ref[...])


def _sublane(dtype):
    return {4: 8, 2: 16, 1: 32}.get(jnp.dtype(dtype).itemsize, 8)


def _round_up(x, m):
    return ((x + m - 1) // m) * m


@functools.lru_cache(maxsize=None)
def _chip_info():
    """Returns (num_tensorcores_per_chip, target_tile_bytes)."""
    try:
        kind = jax.devices()[0].device_kind.lower()
    except Exception:
        kind = ""
    is_v7 = ("v7" in kind) or ("7x" in kind)
    num_tc = 2 if is_v7 else 1
    vmem_bytes = None
    try:
        vmem_bytes = int(pltpu.get_tpu_info().vmem_capacity_bytes)
    except Exception:
        pass
    if vmem_bytes is None:
        vmem_bytes = (64 if is_v7 else 128) * 1024 * 1024
    # Bigger tiles on 128-MiB-VMEM chips (v5e/v6e); ~4 MiB on v7x (64 MiB/TC).
    target = (8 if vmem_bytes >= 96 * 1024 * 1024 else 4) * 1024 * 1024
    return num_tc, target


def _pick_block_cols(W, cap_units):
    """Largest 128-multiple <= cap_units*128 that (preferably) divides W."""
    units = W // _LANE
    cap_units = max(1, min(cap_units, units))
    best = 1
    d = 1
    while d * d <= units:
        if units % d == 0:
            if d <= cap_units:
                best = max(best, d)
            q = units // d
            if q <= cap_units:
                best = max(best, q)
        d += 1
    # If the best divisor is much smaller than the cap, use the cap instead
    # (the ragged last column band is still a 128-multiple).
    if 2 * best < cap_units:
        return cap_units * _LANE
    return best * _LANE


def _even_row_split(B, block_rows, grid_cols, sub, budget_rows):
    """On 2-TC chips: try to make the total program count even (balanced cores)."""
    if ((-(-B // block_rows)) * grid_cols) % 2 == 0:
        return block_rows
    # Allow up to ~1.5x the budgeted tile height to reach an even count
    # (still far below the VMEM limit).
    hi = min(_round_up(-(-B // 2), sub), _round_up(max(budget_rows, sub) * 3 // 2, sub))
    hi = max(hi, sub)
    br = hi
    while br >= sub:
        if ((-(-B // br)) * grid_cols) % 2 == 0:
            return br
        br -= sub
    return block_rows


def _prelu_2d(x, sl, sr):
    """Pallas PReLU on a 2-D (B, W) array; W is a multiple of 128 here."""
    B, W = x.shape
    dtype = x.dtype
    itemsize = jnp.dtype(dtype).itemsize
    sub = _sublane(dtype)
    num_tc, target_bytes = _chip_info()
    target_elems = max(1, target_bytes // itemsize)

    # --- Column (lane) tile: prefer full width (fully contiguous per-tile DMA);
    #     otherwise the largest 128-multiple within budget, divisor-friendly.
    cols_cap = max(_LANE, (target_elems // max(1, min(B, sub))) // _LANE * _LANE)
    if W <= cols_cap:
        block_cols = W
    else:
        block_cols = _pick_block_cols(W, cols_cap // _LANE)
    grid_cols = pl.cdiv(W, block_cols)

    # --- Row (sublane) tile: fill the remaining VMEM budget.
    rows_budget = max(sub, (target_elems // block_cols) // sub * sub)
    block_rows = B if B <= rows_budget else rows_budget  # ==B is exempt from the sublane rule

    # v7x (2 TensorCores) only: balance the program count across both cores.
    if num_tc >= 2 and B > sub:
        block_rows = _even_row_split(B, block_rows, grid_cols, sub, rows_budget)
    grid_rows = pl.cdiv(B, block_rows)

    # Row index is the fastest-varying grid axis so the (1, block_cols) scale
    # tiles keep the same block index across consecutive steps (stay resident).
    grid = (grid_cols, grid_rows)

    return pl.pallas_call(
        _prelu_kernel,
        out_shape=jax.ShapeDtypeStruct((B, W), dtype),
        grid_spec=pltpu.PrefetchScalarGridSpec(
            num_scalar_prefetch=0,
            grid=grid,
            in_specs=[
                pl.BlockSpec((block_rows, block_cols), lambda j, i: (i, j)),
                pl.BlockSpec((1, block_cols), lambda j, i: (0, j)),
                pl.BlockSpec((1, block_cols), lambda j, i: (0, j)),
            ],
            out_specs=pl.BlockSpec((block_rows, block_cols), lambda j, i: (i, j)),
        ),
        compiler_params=pltpu.CompilerParams(
            dimension_semantics=("parallel", "parallel"),
            # ~16-32 MiB of double-buffered tiles; safe on v5e/v6e (128 MiB)
            # and under v7x's 64 MiB/TC physical VMEM.
            vmem_limit_bytes=_VMEM_LIMIT_BYTES,
        ),
    )(x, sl.reshape(1, W), sr.reshape(1, W))


def _prelu_ref(x, sl, sr):
    return jnp.where(x > 0, x * sr[None, :], x * sl[None, :])


def prelu(x, scale_left, scale_right, *, small_input_bytes=_SMALL_INPUT_BYTES):
    """out = where(x > 0, x * scale_right, x * scale_left); x: (B, W), scales: (W,)."""
    B, W = x.shape
    dtype = x.dtype
    # Match PyTorch: parameters are cast to X.dtype before the multiply.
    sl = scale_left.astype(dtype)
    sr = scale_right.astype(dtype)
    itemsize = jnp.dtype(dtype).itemsize

    # Tiny inputs: launch + pipeline prologue dominate; XLA's fused elementwise wins.
    if B * W * itemsize < small_input_bytes:
        return _prelu_ref(x, sl, sr)

    # Lane-dense folding: if W is not a multiple of 128, fold k consecutive rows
    # into one so the last (lane) dim becomes a 128-multiple -> unmasked stores.
    k = _LANE // math.gcd(W, _LANE)
    if k == 1:
        return _prelu_2d(x, sl, sr)

    sl_f = jnp.tile(sl, k)
    sr_f = jnp.tile(sr, k)
    b_main = (B // k) * k

    if b_main == B:
        return _prelu_2d(x.reshape(B // k, k * W), sl_f, sr_f).reshape(B, W)

    if b_main == 0:
        # Fewer than k rows of a non-128-multiple width: not worth a kernel.
        return _prelu_ref(x, sl, sr)

    # Remainder path: folded kernel on the first b_main rows, plain elementwise
    # on the (< k) tail rows. (No jnp.pad: that would cost a full extra HBM copy.)
    main = _prelu_2d(x[:b_main].reshape(b_main // k, k * W), sl_f, sr_f).reshape(b_main, W)
    tail = _prelu_ref(x[b_main:], sl, sr)
    return jnp.concatenate([main, tail], axis=0)


if __name__ == "__main__":
    key = jax.random.PRNGKey(0)

    cases = [
        (8, 32, jnp.float32),       # tiny -> small-input fast path
        (512, 256, jnp.float32),    # 128-multiple width -> direct Pallas path
        (2048, 96, jnp.float32),    # narrow width -> lane-dense fold (k=4)
        (2050, 96, jnp.float32),    # fold + remainder tail rows
        (1024, 384, jnp.bfloat16),  # packed dtype
    ]

    for i, (batch, width, dtype) in enumerate(cases):
        kx, kl, kr = jax.random.split(jax.random.fold_in(key, i), 3)
        x = jax.random.normal(kx, (batch, width), dtype=jnp.float32).astype(dtype)
        scale_left = jax.random.normal(kl, (width,), dtype=jnp.float32)   # ~ torch.randn([width])
        scale_right = jax.random.normal(kr, (width,), dtype=jnp.float32)

        out = jax.block_until_ready(prelu(x, scale_left, scale_right))

        ref = _prelu_ref(x, scale_left.astype(dtype), scale_right.astype(dtype))
        assert out.shape == x.shape
        assert out.dtype == x.dtype
        tol = 1e-6 if dtype == jnp.float32 else 1e-2
        assert jnp.allclose(out.astype(jnp.float32), ref.astype(jnp.float32),
                            atol=tol, rtol=tol), (batch, width, str(dtype))

    print("KERNEL_OK")
</pallas_src>

<mosaic_0001>
module attributes {stable_mosaic.version = 11 : i64} {
  func.func @_prelu_kernel(%arg0: i32, %arg1: i32, %arg2: memref<512x256xf32, #tpu.memory_space<vmem>>, %arg3: memref<1x256xf32, #tpu.memory_space<vmem>>, %arg4: memref<1x256xf32, #tpu.memory_space<vmem>>, %arg5: memref<512x256xf32, #tpu.memory_space<vmem>>) attributes {dimension_semantics = [#tpu.dimension_semantics<parallel>, #tpu.dimension_semantics<parallel>], iteration_bounds = array<i64: 1, 1>, scalar_prefetch = 0 : i64, scratch_operands = 0 : i64, tpu.core_type = #tpu.core_type<tc>, window_params = [{transform_indices = @transform_0, window_bounds = array<i64: 512, 256>}, {transform_indices = @transform_1, window_bounds = array<i64: 1, 256>}, {transform_indices = @transform_2, window_bounds = array<i64: 1, 256>}, {transform_indices = @transform_3, window_bounds = array<i64: 512, 256>}]} {
    %c0 = arith.constant 0 : index
    %c0_0 = arith.constant 0 : index
    %0 = vector.load %arg2[%c0, %c0_0] : memref<512x256xf32, #tpu.memory_space<vmem>>, vector<512x256xf32>
    %cst = arith.constant 0.000000e+00 : f32
    %1 = vector.broadcast %cst : f32 to vector<512x256xf32>
    %2 = arith.cmpf ogt, %0, %1 : vector<512x256xf32>
    %c0_1 = arith.constant 0 : index
    %c0_2 = arith.constant 0 : index
    %3 = vector.load %arg4[%c0_1, %c0_2] : memref<1x256xf32, #tpu.memory_space<vmem>>, vector<1x256xf32>
    %c0_3 = arith.constant 0 : index
    %c0_4 = arith.constant 0 : index
    %4 = vector.load %arg3[%c0_3, %c0_4] : memref<1x256xf32, #tpu.memory_space<vmem>>, vector<1x256xf32>
    %5 = vector.shape_cast %3 : vector<1x256xf32> to vector<1x256xf32>
    %6 = vector.broadcast %5 : vector<1x256xf32> to vector<512x256xf32>
    %7 = vector.shape_cast %4 : vector<1x256xf32> to vector<1x256xf32>
    %8 = vector.broadcast %7 : vector<1x256xf32> to vector<512x256xf32>
    %9 = arith.select %2, %6, %8 : vector<512x256xi1>, vector<512x256xf32>
    %10 = arith.mulf %0, %9 : vector<512x256xf32>
    %c0_5 = arith.constant 0 : index
    %c0_6 = arith.constant 0 : index
    %11 = vector.load %arg5[%c0_5, %c0_6] : memref<512x256xf32, #tpu.memory_space<vmem>>, vector<512x256xf32>
    tpu.vector_store %arg5[%c0_5, %c0_6], %10 {strides = array<i32>} : memref<512x256xf32, #tpu.memory_space<vmem>>, vector<512x256xf32>,
    return
  }
  func.func @transform_0(%arg0: i32, %arg1: i32) -> (i32, i32) {
    %c0_i32 = arith.constant 0 : i32
    return %arg1, %arg0 : i32, i32
  }
  func.func @transform_1(%arg0: i32, %arg1: i32) -> (i32, i32) {
    %c0_i32 = arith.constant 0 : i32
    %c0_i32_0 = arith.constant 0 : i32
    return %c0_i32, %arg0 : i32, i32
  }
  func.func @transform_2(%arg0: i32, %arg1: i32) -> (i32, i32) {
    %c0_i32 = arith.constant 0 : i32
    %c0_i32_0 = arith.constant 0 : i32
    return %c0_i32, %arg0 : i32, i32
  }
  func.func @transform_3(%arg0: i32, %arg1: i32) -> (i32, i32) {
    %c0_i32 = arith.constant 0 : i32
    return %arg1, %arg0 : i32, i32
  }
}

</mosaic_0001>

<llo_original>
// kernel: tpu_custom_call.1
$region0: #{tpu_custom_call.1}
  #allocation0 [shape = 'u32[]', space=smem, size = 0x4, offset = 0x4, fixed_abs, tag = 'smem constant byte address 0x4 - core index']
  #allocation1 [shape = 'u32[144,128]{1,0:T(1,128)}', space=vmem, size = 0x12000, scoped, tag = 'internal scratch']
  %s0 = inlined_call_operand.hbm [shape: f32[512,256], index: 0, kind: input, shape index: {}]
  %s1 = inlined_call_operand.vmem [shape: f32[1,256], index: 1, kind: input, shape index: {}]
  %s2 = inlined_call_operand.vmem [shape: f32[1,256], index: 2, kind: input, shape index: {}]
  %s3 = inlined_call_operand.hbm [shape: f32[512,256], index: 3, kind: output, shape index: {}]
  %s4 = sld [smem:[#allocation0]]
  $region26: #{tpu_custom_call.1} parent=0
    _
  %s6 = ssub.s32 1, %s4
  %s7 = scalar_select 0, %s6, %s4
  $region1: #{tpu_custom_call.1} parent=0
    #allocation2 [shape = 'u8[524288]{0}', space=vmem, size = 0x80000, scoped, tag = 'input window, operand 0, single buffered']
    #allocation3 [shape = 's32[1]{0}', space=sflag, size = 0x4, scoped, tag = 'scoped memory for tpu_custom_call.1']
    #allocation4 [shape = 's32[1]{0}', space=sflag, size = 0x4, scoped, tag = 'scoped memory for tpu_custom_call.1']
    #allocation5 [shape = 'u8[524288]{0}', space=vmem, size = 0x80000, scoped, tag = 'output window, operand 0, single buffered']
    %8 = vsyncpa [#allocation3], 0
    %9 = vsyncpa [#allocation4], 0
    // Predicated region
    $region2: #{tpu_custom_call.1} parent=1 // pred_check
      _
    $region3: #{tpu_custom_call.1} parent=1 // pred_check_branch
      %11 = sbr.rel (0) target = $region5
    $region4: #{tpu_custom_call.1} parent=1 // pred_region
      %s13 = ssub.s32 16384, 16384
      %14 = vsyncadd [#allocation3], %s13
      %s15 = sshll.u32 [#allocation2], 4
      %s16 = int_to_ptr.vmem [resolvable:$true] %s15
      %21 = dma.hbm_to_vmem [thread:$0]  %s0, 16384, %s16, [#allocation3], 256, 256, 16
    $region5: #{tpu_custom_call.1} parent=1 // pred_fallthru
      _
    // Predicated region
    $region6: #{tpu_custom_call.1} parent=1 // pred_check
      _
    $region7: #{tpu_custom_call.1} parent=1 // pred_check_branch
      %23 = sbr.rel (0) target = $region9
    $region8: #{tpu_custom_call.1} parent=1 // pred_region
      _
    $region9: #{tpu_custom_call.1} parent=1 // pred_fallthru
      _
    // Predicated region
    $region10: #{tpu_custom_call.1} parent=1 // pred_check
      _
    $region11: #{tpu_custom_call.1} parent=1 // pred_check_branch
      %25 = sbr.rel (0) target = $region13
    $region12: #{tpu_custom_call.1} parent=1 // pred_region
      _
    $region13: #{tpu_custom_call.1} parent=1 // pred_fallthru
      _
    // Predicated region
    $region14: #{tpu_custom_call.1} parent=1 // pred_check
      _
    $region15: #{tpu_custom_call.1} parent=1 // pred_check_branch
      %27 = sbr.rel (0) target = $region17
    $region16: #{tpu_custom_call.1} parent=1 // pred_region
      %28 = dma.done [#allocation3], 16384
    $region17: #{tpu_custom_call.1} parent=1 // pred_fallthru
      _
    %v29 = vld [vmem:[#allocation2] sm:$0xff]
    %v30 = vld [vmem:[#allocation2 + $0x8] sm:$0xff]
    %v31 = vld [vmem:[#allocation2 + $0x10] sm:$0xff]
    %v32 = vld [vmem:[#allocation2 + $0x18] sm:$0xff]
    %v33 = vld [vmem:[#allocation2 + $0x20] sm:$0xff]
    %v34 = vld [vmem:[#allocation2 + $0x28] sm:$0xff]
    %v35 = vld [vmem:[#allocation2 + $0x30] sm:$0xff]
    %v36 = vld [vmem:[#allocation2 + $0x38] sm:$0xff]
    %v37 = vld [vmem:[#allocation2 + $0x40] sm:$0xff]
    %v38 = vld [vmem:[#allocation2 + $0x48] sm:$0xff]
    %v39 = vld [vmem:[#allocation2 + $0x50] sm:$0xff]
    %v40 = vld [vmem:[#allocation2 + $0x58] sm:$0xff]
    %v41 = vld [vmem:[#allocation2 + $0x60] sm:$0xff]
    %v42 = vld [vmem:[#allocation2 + $0x68] sm:$0xff]
    %v43 = vld [vmem:[#allocation2 + $0x70] sm:$0xff]
    %v44 = vld [vmem:[#allocation2 + $0x78] sm:$0xff]
    %v45 = vld [vmem:[#allocation2 + $0x80] sm:$0xff]
    %v46 = vld [vmem:[#allocation2 + $0x88] sm:$0xff]
    %v47 = vld [vmem:[#allocation2 + $0x90] sm:$0xff]
    %v48 = vld [vmem:[#allocation2 + $0x98] sm:$0xff]
    %v49 = vld [vmem:[#allocation2 + $0xa0] sm:$0xff]
    %v50 = vld [vmem:[#allocation2 + $0xa8] sm:$0xff]
    %v51 = vld [vmem:[#allocation2 + $0xb0] sm:$0xff]
    %v52 = vld [vmem:[#allocation2 + $0xb8] sm:$0xff]
    %v53 = vld [vmem:[#allocation2 + $0xc0] sm:$0xff]
    %v54 = vld [vmem:[#allocation2 + $0xc8] sm:$0xff]
    %v55 = vld [vmem:[#allocation2 + $0xd0] sm:$0xff]
    %v56 = vld [vmem:[#allocation2 + $0xd8] sm:$0xff]
    %v57 = vld [vmem:[#allocation2 + $0xe0] sm:$0xff]
    %v58 = vld [vmem:[#allocation2 + $0xe8] sm:$0xff]
    %v59 = vld [vmem:[#allocation2 + $0xf0] sm:$0xff]
    %v60 = vld [vmem:[#allocation2 + $0xf8] sm:$0xff]
    %v61 = vld [vmem:[#allocation2 + $0x100] sm:$0xff]
    %v62 = vld [vmem:[#allocation2 + $0x108] sm:$0xff]
    %v63 = vld [vmem:[#allocation2 + $0x110] sm:$0xff]
    %v64 = vld [vmem:[#allocation2 + $0x118] sm:$0xff]
    %v65 = vld [vmem:[#allocation2 + $0x120] sm:$0xff]
    %v66 = vld [vmem:[#allocation2 + $0x128] sm:$0xff]
    %v67 = vld [vmem:[#allocation2 + $0x130] sm:$0xff]
    %v68 = vld [vmem:[#allocation2 + $0x138] sm:$0xff]
    %v69 = vld [vmem:[#allocation2 + $0x140] sm:$0xff]
    %v70 = vld [vmem:[#allocation2 + $0x148] sm:$0xff]
    %v71 = vld [vmem:[#allocation2 + $0x150] sm:$0xff]
    %v72 = vld [vmem:[#allocation2 + $0x158] sm:$0xff]
    %v73 = vld [vmem:[#allocation2 + $0x160] sm:$0xff]
    %v74 = vld [vmem:[#allocation2 + $0x168] sm:$0xff]
    %v75 = vld [vmem:[#allocation2 + $0x170] sm:$0xff]
    %v76 = vld [vmem:[#allocation2 + $0x178] sm:$0xff]
    %v77 = vld [vmem:[#allocation2 + $0x180] sm:$0xff]
    %v78 = vld [vmem:[#allocation2 + $0x188] sm:$0xff]
    %v79 = vld [vmem:[#allocation2 + $0x190] sm:$0xff]
    %v80 = vld [vmem:[#allocation2 + $0x198] sm:$0xff]
    %v81 = vld [vmem:[#allocation2 + $0x1a0] sm:$0xff]
    %v82 = vld [vmem:[#allocation2 + $0x1a8] sm:$0xff]
    %v83 = vld [vmem:[#allocation2 + $0x1b0] sm:$0xff]
    %v84 = vld [vmem:[#allocation2 + $0x1b8] sm:$0xff]
    %v85 = vld [vmem:[#allocation2 + $0x1c0] sm:$0xff]
    %v86 = vld [vmem:[#allocation2 + $0x1c8] sm:$0xff]
    %v87 = vld [vmem:[#allocation2 + $0x1d0] sm:$0xff]
    %v88 = vld [vmem:[#allocation2 + $0x1d8] sm:$0xff]
    %v89 = vld [vmem:[#allocation2 + $0x1e0] sm:$0xff]
    %v90 = vld [vmem:[#allocation2 + $0x1e8] sm:$0xff]
    %v91 = vld [vmem:[#allocation2 + $0x1f0] sm:$0xff]
    %v92 = vld [vmem:[#allocation2 + $0x1f8] sm:$0xff]
    %v93 = vld [vmem:[#allocation2 + $0x200] sm:$0xff]
    %v94 = vld [vmem:[#allocation2 + $0x208] sm:$0xff]
    %v95 = vld [vmem:[#allocation2 + $0x210] sm:$0xff]
    %v96 = vld [vmem:[#allocation2 + $0x218] sm:$0xff]
    %v97 = vld [vmem:[#allocation2 + $0x220] sm:$0xff]
    %v98 = vld [vmem:[#allocation2 + $0x228] sm:$0xff]
    %v99 = vld [vmem:[#allocation2 + $0x230] sm:$0xff]
    %v100 = vld [vmem:[#allocation2 + $0x238] sm:$0xff]
    %v101 = vld [vmem:[#allocation2 + $0x240] sm:$0xff]
    %v102 = vld [vmem:[#allocation2 + $0x248] sm:$0xff]
    %v103 = vld [vmem:[#allocation2 + $0x250] sm:$0xff]
    %v104 = vld [vmem:[#allocation2 + $0x258] sm:$0xff]
    %v105 = vld [vmem:[#allocation2 + $0x260] sm:$0xff]
    %v106 = vld [vmem:[#allocation2 + $0x268] sm:$0xff]
    %v107 = vld [vmem:[#allocation2 + $0x270] sm:$0xff]
    %v108 = vld [vmem:[#allocation2 + $0x278] sm:$0xff]
    %v109 = vld [vmem:[#allocation2 + $0x280] sm:$0xff]
    %v110 = vld [vmem:[#allocation2 + $0x288] sm:$0xff]
    %v111 = vld [vmem:[#allocation2 + $0x290] sm:$0xff]
    %v112 = vld [vmem:[#allocation2 + $0x298] sm:$0xff]
    %v113 = vld [vmem:[#allocation2 + $0x2a0] sm:$0xff]
    %v114 = vld [vmem:[#allocation2 + $0x2a8] sm:$0xff]
    %v115 = vld [vmem:[#allocation2 + $0x2b0] sm:$0xff]
    %v116 = vld [vmem:[#allocation2 + $0x2b8] sm:$0xff]
    %v117 = vld [vmem:[#allocation2 + $0x2c0] sm:$0xff]
    %v118 = vld [vmem:[#allocation2 + $0x2c8] sm:$0xff]
    %v119 = vld [vmem:[#allocation2 + $0x2d0] sm:$0xff]
    %v120 = vld [vmem:[#allocation2 + $0x2d8] sm:$0xff]
    %v121 = vld [vmem:[#allocation2 + $0x2e0] sm:$0xff]
    %v122 = vld [vmem:[#allocation2 + $0x2e8] sm:$0xff]
    %v123 = vld [vmem:[#allocation2 + $0x2f0] sm:$0xff]
    %v124 = vld [vmem:[#allocation2 + $0x2f8] sm:$0xff]
    %v125 = vld [vmem:[#allocation2 + $0x300] sm:$0xff]
    %v126 = vld [vmem:[#allocation2 + $0x308] sm:$0xff]
    %v127 = vld [vmem:[#allocation2 + $0x310] sm:$0xff]
    %v128 = vld [vmem:[#allocation2 + $0x318] sm:$0xff]
    %v129 = vld [vmem:[#allocation2 + $0x320] sm:$0xff]
    %v130 = vld [vmem:[#allocation2 + $0x328] sm:$0xff]
    %v131 = vld [vmem:[#allocation2 + $0x330] sm:$0xff]
    %v132 = vld [vmem:[#allocation2 + $0x338] sm:$0xff]
    %v133 = vld [vmem:[#allocation2 + $0x340] sm:$0xff]
    %v134 = vld [vmem:[#allocation2 + $0x348] sm:$0xff]
    %v135 = vld [vmem:[#allocation2 + $0x350] sm:$0xff]
    %v136 = vld [vmem:[#allocation2 + $0x358] sm:$0xff]
    %v137 = vld [vmem:[#allocation2 + $0x360] sm:$0xff]
    %v138 = vld [vmem:[#allocation2 + $0x368] sm:$0xff]
    %v139 = vld [vmem:[#allocation2 + $0x370] sm:$0xff]
    %v140 = vld [vmem:[#allocation2 + $0x378] sm:$0xff]
    %v141 = vld [vmem:[#allocation2 + $0x380] sm:$0xff]
    %v142 = vld [vmem:[#allocation2 + $0x388] sm:$0xff]
    %v143 = vld [vmem:[#allocation2 + $0x390] sm:$0xff]
    %v144 = vld [vmem:[#allocation2 + $0x398] sm:$0xff]
    %v145 = vld [vmem:[#allocation2 + $0x3a0] sm:$0xff]
    %v146 = vld [vmem:[#allocation2 + $0x3a8] sm:$0xff]
    %v147 = vld [vmem:[#allocation2 + $0x3b0] sm:$0xff]
    %v148 = vld [vmem:[#allocation2 + $0x3b8] sm:$0xff]
    %v149 = vld [vmem:[#allocation2 + $0x3c0] sm:$0xff]
    %v150 = vld [vmem:[#allocation2 + $0x3c8] sm:$0xff]
    %v151 = vld [vmem:[#allocation2 + $0x3d0] sm:$0xff]
    %v152 = vld [vmem:[#allocation2 + $0x3d8] sm:$0xff]
    %v153 = vld [vmem:[#allocation2 + $0x3e0] sm:$0xff]
    %v154 = vld [vmem:[#allocation2 + $0x3e8] sm:$0xff]
    %v155 = vld [vmem:[#allocation2 + $0x3f0] sm:$0xff]
    %v156 = vld [vmem:[#allocation2 + $0x3f8] sm:$0xff]
    %vm157 = vcmp.gt.f32.partialorder %v29, 0.0
    %vm158 = vcmp.gt.f32.partialorder %v30, 0.0
    %vm159 = vcmp.gt.f32.partialorder %v31, 0.0
    %vm160 = vcmp.gt.f32.partialorder %v32, 0.0
    %vm161 = vcmp.gt.f32.partialorder %v33, 0.0
    %vm162 = vcmp.gt.f32.partialorder %v34, 0.0
    %vm163 = vcmp.gt.f32.partialorder %v35, 0.0
    %vm164 = vcmp.gt.f32.partialorder %v36, 0.0
    %vm165 = vcmp.gt.f32.partialorder %v37, 0.0
    %vm166 = vcmp.gt.f32.partialorder %v38, 0.0
    %vm167 = vcmp.gt.f32.partialorder %v39, 0.0
    %vm168 = vcmp.gt.f32.partialorder %v40, 0.0
    %vm169 = vcmp.gt.f32.partialorder %v41, 0.0
    %vm170 = vcmp.gt.f32.partialorder %v42, 0.0
    %vm171 = vcmp.gt.f32.partialorder %v43, 0.0
    %vm172 = vcmp.gt.f32.partialorder %v44, 0.0
    %vm173 = vcmp.gt.f32.partialorder %v45, 0.0
    %vm174 = vcmp.gt.f32.partialorder %v46, 0.0
    %vm175 = vcmp.gt.f32.partialorder %v47, 0.0
    %vm176 = vcmp.gt.f32.partialorder %v48, 0.0
    %vm177 = vcmp.gt.f32.partialorder %v49, 0.0
    %vm178 = vcmp.gt.f32.partialorder %v50, 0.0
    %vm179 = vcmp.gt.f32.partialorder %v51, 0.0
    %vm180 = vcmp.gt.f32.partialorder %v52, 0.0
    %vm181 = vcmp.gt.f32.partialorder %v53, 0.0
    %vm182 = vcmp.gt.f32.partialorder %v54, 0.0
    %vm183 = vcmp.gt.f32.partialorder %v55, 0.0
    %vm184 = vcmp.gt.f32.partialorder %v56, 0.0
    %vm185 = vcmp.gt.f32.partialorder %v57, 0.0
    %vm186 = vcmp.gt.f32.partialorder %v58, 0.0
    %vm187 = vcmp.gt.f32.partialorder %v59, 0.0
    %vm188 = vcmp.gt.f32.partialorder %v60, 0.0
    %vm189 = vcmp.gt.f32.partialorder %v61, 0.0
    %vm190 = vcmp.gt.f32.partialorder %v62, 0.0
    %vm191 = vcmp.gt.f32.partialorder %v63, 0.0
    %vm192 = vcmp.gt.f32.partialorder %v64, 0.0
    %vm193 = vcmp.gt.f32.partialorder %v65, 0.0
    %vm194 = vcmp.gt.f32.partialorder %v66, 0.0
    %vm195 = vcmp.gt.f32.partialorder %v67, 0.0
    %vm196 = vcmp.gt.f32.partialorder %v68, 0.0
    %vm197 = vcmp.gt.f32.partialorder %v69, 0.0
    %vm198 = vcmp.gt.f32.partialorder %v70, 0.0
    %vm199 = vcmp.gt.f32.partialorder %v71, 0.0
    %vm200 = vcmp.gt.f32.partialorder %v72, 0.0
    %vm201 = vcmp.gt.f32.partialorder %v73, 0.0
    %vm202 = vcmp.gt.f32.partialorder %v74, 0.0
    %vm203 = vcmp.gt.f32.partialorder %v75, 0.0
    %vm204 = vcmp.gt.f32.partialorder %v76, 0.0
    %vm205 = vcmp.gt.f32.partialorder %v77, 0.0
    %vm206 = vcmp.gt.f32.partialorder %v78, 0.0
    %vm207 = vcmp.gt.f32.partialorder %v79, 0.0
    %vm208 = vcmp.gt.f32.partialorder %v80, 0.0
    %vm209 = vcmp.gt.f32.partialorder %v81, 0.0
    %vm210 = vcmp.gt.f32.partialorder %v82, 0.0
    %vm211 = vcmp.gt.f32.partialorder %v83, 0.0
    %vm212 = vcmp.gt.f32.partialorder %v84, 0.0
    %vm213 = vcmp.gt.f32.partialorder %v85, 0.0
    %vm214 = vcmp.gt.f32.partialorder %v86, 0.0
    %vm215 = vcmp.gt.f32.partialorder %v87, 0.0
    %vm216 = vcmp.gt.f32.partialorder %v88, 0.0
    %vm217 = vcmp.gt.f32.partialorder %v89, 0.0
    %vm218 = vcmp.gt.f32.partialorder %v90, 0.0
    %vm219 = vcmp.gt.f32.partialorder %v91, 0.0
    %vm220 = vcmp.gt.f32.partialorder %v92, 0.0
    %vm221 = vcmp.gt.f32.partialorder %v93, 0.0
    %vm222 = vcmp.gt.f32.partialorder %v94, 0.0
    %vm223 = vcmp.gt.f32.partialorder %v95, 0.0
    %vm224 = vcmp.gt.f32.partialorder %v96, 0.0
    %vm225 = vcmp.gt.f32.partialorder %v97, 0.0
    %vm226 = vcmp.gt.f32.partialorder %v98, 0.0
    %vm227 = vcmp.gt.f32.partialorder %v99, 0.0
    %vm228 = vcmp.gt.f32.partialorder %v100, 0.0
    %vm229 = vcmp.gt.f32.partialorder %v101, 0.0
    %vm230 = vcmp.gt.f32.partialorder %v102, 0.0
    %vm231 = vcmp.gt.f32.partialorder %v103, 0.0
    %vm232 = vcmp.gt.f32.partialorder %v104, 0.0
    %vm233 = vcmp.gt.f32.partialorder %v105, 0.0
    %vm234 = vcmp.gt.f32.partialorder %v106, 0.0
    %vm235 = vcmp.gt.f32.partialorder %v107, 0.0
    %vm236 = vcmp.gt.f32.partialorder %v108, 0.0
    %vm237 = vcmp.gt.f32.partialorder %v109, 0.0
    %vm238 = vcmp.gt.f32.partialorder %v110, 0.0
    %vm239 = vcmp.gt.f32.partialorder %v111, 0.0
    %vm240 = vcmp.gt.f32.partialorder %v112, 0.0
    %vm241 = vcmp.gt.f32.partialorder %v113, 0.0
    %vm242 = vcmp.gt.f32.partialorder %v114, 0.0
    %vm243 = vcmp.gt.f32.partialorder %v115, 0.0
    %vm244 = vcmp.gt.f32.partialorder %v116, 0.0
    %vm245 = vcmp.gt.f32.partialorder %v117, 0.0
    %vm246 = vcmp.gt.f32.partialorder %v118, 0.0
    %vm247 = vcmp.gt.f32.partialorder %v119, 0.0
    %vm248 = vcmp.gt.f32.partialorder %v120, 0.0
    %vm249 = vcmp.gt.f32.partialorder %v121, 0.0
    %vm250 = vcmp.gt.f32.partialorder %v122, 0.0
    %vm251 = vcmp.gt.f32.partialorder %v123, 0.0
    %vm252 = vcmp.gt.f32.partialorder %v124, 0.0
    %vm253 = vcmp.gt.f32.partialorder %v125, 0.0
    %vm254 = vcmp.gt.f32.partialorder %v126, 0.0
    %vm255 = vcmp.gt.f32.partialorder %v127, 0.0
    %vm256 = vcmp.gt.f32.partialorder %v128, 0.0
    %vm257 = vcmp.gt.f32.partialorder %v129, 0.0
    %vm258 = vcmp.gt.f32.partialorder %v130, 0.0
    %vm259 = vcmp.gt.f32.partialorder %v131, 0.0
    %vm260 = vcmp.gt.f32.partialorder %v132, 0.0
    %vm261 = vcmp.gt.f32.partialorder %v133, 0.0
    %vm262 = vcmp.gt.f32.partialorder %v134, 0.0
    %vm263 = vcmp.gt.f32.partialorder %v135, 0.0
    %vm264 = vcmp.gt.f32.partialorder %v136, 0.0
    %vm265 = vcmp.gt.f32.partialorder %v137, 0.0
    %vm266 = vcmp.gt.f32.partialorder %v138, 0.0
    %vm267 = vcmp.gt.f32.partialorder %v139, 0.0
    %vm268 = vcmp.gt.f32.partialorder %v140, 0.0
    %vm269 = vcmp.gt.f32.partialorder %v141, 0.0
    %vm270 = vcmp.gt.f32.partialorder %v142, 0.0
    %vm271 = vcmp.gt.f32.partialorder %v143, 0.0
    %vm272 = vcmp.gt.f32.partialorder %v144, 0.0
    %vm273 = vcmp.gt.f32.partialorder %v145, 0.0
    %vm274 = vcmp.gt.f32.partialorder %v146, 0.0
    %vm275 = vcmp.gt.f32.partialorder %v147, 0.0
    %vm276 = vcmp.gt.f32.partialorder %v148, 0.0
    %vm277 = vcmp.gt.f32.partialorder %v149, 0.0
    %vm278 = vcmp.gt.f32.partialorder %v150, 0.0
    %vm279 = vcmp.gt.f32.partialorder %v151, 0.0
    %vm280 = vcmp.gt.f32.partialorder %v152, 0.0
    %vm281 = vcmp.gt.f32.partialorder %v153, 0.0
    %vm282 = vcmp.gt.f32.partialorder %v154, 0.0
    %vm283 = vcmp.gt.f32.partialorder %v155, 0.0
    %vm284 = vcmp.gt.f32.partialorder %v156, 0.0
    %v285 = vld [vmem:[%s2] sm:$0x3]
    %v286 = vld [vmem:[%s1] sm:$0x3]
    %v288 = vlaneseq
    %v289 = vshrl.u32 %v288, 7
    %v290 = vsub.s32 0, %v289
    %v291 = vrot.slane %v285, %v290
    %v292 = vlaneseq
    %v293 = vshrl.u32 %v292, 7
    %v294 = vsub.s32 1, %v293
    %v295 = vrot.slane %v285, %v294
    %v299 = vlaneseq
    %v300 = vshrl.u32 %v299, 7
    %v301 = vsub.s32 0, %v300
    %v302 = vrot.slane %v286, %v301
    %v303 = vlaneseq
    %v304 = vshrl.u32 %v303, 7
    %v305 = vsub.s32 1, %v304
    %v306 = vrot.slane %v286, %v305
    %v309 = vsel %vm157, %v291, %v302
    %v310 = vsel %vm158, %v295, %v306
    %v311 = vsel %vm159, %v291, %v302
    %v312 = vsel %vm160, %v295, %v306
    %v313 = vsel %vm161, %v291, %v302
    %v314 = vsel %vm162, %v295, %v306
    %v315 = vsel %vm163, %v291, %v302
    %v316 = vsel %vm164, %v295, %v306
    %v317 = vsel %vm165, %v291, %v302
    %v318 = vsel %vm166, %v295, %v306
    %v319 = vsel %vm167, %v291, %v302
    %v320 = vsel %vm168, %v295, %v306
    %v321 = vsel %vm169, %v291, %v302
    %v322 = vsel %vm170, %v295, %v306
    %v323 = vsel %vm171, %v291, %v302
    %v324 = vsel %vm172, %v295, %v306
    %v325 = vsel %vm173, %v291, %v302
    %v326 = vsel %vm174, %v295, %v306
    %v327 = vsel %vm175, %v291, %v302
    %v328 = vsel %vm176, %v295, %v306
    %v329 = vsel %vm177, %v291, %v302
    %v330 = vsel %vm178, %v295, %v306
    %v331 = vsel %vm179, %v291, %v302
    %v332 = vsel %vm180, %v295, %v306
    %v333 = vsel %vm181, %v291, %v302
    %v334 = vsel %vm182, %v295, %v306
    %v335 = vsel %vm183, %v291, %v302
    %v336 = vsel %vm184, %v295, %v306
    %v337 = vsel %vm185, %v291, %v302
    %v338 = vsel %vm186, %v295, %v306
    %v339 = vsel %vm187, %v291, %v302
    %v340 = vsel %vm188, %v295, %v306
    %v341 = vsel %vm189, %v291, %v302
    %v342 = vsel %vm190, %v295, %v306
    %v343 = vsel %vm191, %v291, %v302
    %v344 = vsel %vm192, %v295, %v306
    %v345 = vsel %vm193, %v291, %v302
    %v346 = vsel %vm194, %v295, %v306
    %v347 = vsel %vm195, %v291, %v302
    %v348 = vsel %vm196, %v295, %v306
    %v349 = vsel %vm197, %v291, %v302
    %v350 = vsel %vm198, %v295, %v306
    %v351 = vsel %vm199, %v291, %v302
    %v352 = vsel %vm200, %v295, %v306
    %v353 = vsel %vm201, %v291, %v302
    %v354 = vsel %vm202, %v295, %v306
    %v355 = vsel %vm203, %v291, %v302
    %v356 = vsel %vm204, %v295, %v306
    %v357 = vsel %vm205, %v291, %v302
    %v358 = vsel %vm206, %v295, %v306
    %v359 = vsel %vm207, %v291, %v302
    %v360 = vsel %vm208, %v295, %v306
    %v361 = vsel %vm209, %v291, %v302
    %v362 = vsel %vm210, %v295, %v306
    %v363 = vsel %vm211, %v291, %v302
    %v364 = vsel %vm212, %v295, %v306
    %v365 = vsel %vm213, %v291, %v302
    %v366 = vsel %vm214, %v295, %v306
    %v367 = vsel %vm215, %v291, %v302
    %v368 = vsel %vm216, %v295, %v306
    %v369 = vsel %vm217, %v291, %v302
    %v370 = vsel %vm218, %v295, %v306
    %v371 = vsel %vm219, %v291, %v302
    %v372 = vsel %vm220, %v295, %v306
    %v373 = vsel %vm221, %v291, %v302
    %v374 = vsel %vm222, %v295, %v306
    %v375 = vsel %vm223, %v291, %v302
    %v376 = vsel %vm224, %v295, %v306
    %v377 = vsel %vm225, %v291, %v302
    %v378 = vsel %vm226, %v295, %v306
    %v379 = vsel %vm227, %v291, %v302
    %v380 = vsel %vm228, %v295, %v306
    %v381 = vsel %vm229, %v291, %v302
    %v382 = vsel %vm230, %v295, %v306
    %v383 = vsel %vm231, %v291, %v302
    %v384 = vsel %vm232, %v295, %v306
    %v385 = vsel %vm233, %v291, %v302
    %v386 = vsel %vm234, %v295, %v306
    %v387 = vsel %vm235, %v291, %v302
    %v388 = vsel %vm236, %v295, %v306
    %v389 = vsel %vm237, %v291, %v302
    %v390 = vsel %vm238, %v295, %v306
    %v391 = vsel %vm239, %v291, %v302
    %v392 = vsel %vm240, %v295, %v306
    %v393 = vsel %vm241, %v291, %v302
    %v394 = vsel %vm242, %v295, %v306
    %v395 = vsel %vm243, %v291, %v302
    %v396 = vsel %vm244, %v295, %v306
    %v397 = vsel %vm245, %v291, %v302
    %v398 = vsel %vm246, %v295, %v306
    %v399 = vsel %vm247, %v291, %v302
    %v400 = vsel %vm248, %v295, %v306
    %v401 = vsel %vm249, %v291, %v302
    %v402 = vsel %vm250, %v295, %v306
    %v403 = vsel %vm251, %v291, %v302
    %v404 = vsel %vm252, %v295, %v306
    %v405 = vsel %vm253, %v291, %v302
    %v406 = vsel %vm254, %v295, %v306
    %v407 = vsel %vm255, %v291, %v302
    %v408 = vsel %vm256, %v295, %v306
    %v409 = vsel %vm257, %v291, %v302
    %v410 = vsel %vm258, %v295, %v306
    %v411 = vsel %vm259, %v291, %v302
    %v412 = vsel %vm260, %v295, %v306
    %v413 = vsel %vm261, %v291, %v302
    %v414 = vsel %vm262, %v295, %v306
    %v415 = vsel %vm263, %v291, %v302
    %v416 = vsel %vm264, %v295, %v306
    %v417 = vsel %vm265, %v291, %v302
    %v418 = vsel %vm266, %v295, %v306
    %v419 = vsel %vm267, %v291, %v302
    %v420 = vsel %vm268, %v295, %v306
    %v421 = vsel %vm269, %v291, %v302
    %v422 = vsel %vm270, %v295, %v306
    %v423 = vsel %vm271, %v291, %v302
    %v424 = vsel %vm272, %v295, %v306
    %v425 = vsel %vm273, %v291, %v302
    %v426 = vsel %vm274, %v295, %v306
    %v427 = vsel %vm275, %v291, %v302
    %v428 = vsel %vm276, %v295, %v306
    %v429 = vsel %vm277, %v291, %v302
    %v430 = vsel %vm278, %v295, %v306
    %v431 = vsel %vm279, %v291, %v302
    %v432 = vsel %vm280, %v295, %v306
    %v433 = vsel %vm281, %v291, %v302
    %v434 = vsel %vm282, %v295, %v306
    %v435 = vsel %vm283, %v291, %v302
    %v436 = vsel %vm284, %v295, %v306
    %v437 = vmul.f32 %v29, %v309
    %v438 = vmul.f32 %v30, %v310
    %v439 = vmul.f32 %v31, %v311
    %v440 = vmul.f32 %v32, %v312
    %v441 = vmul.f32 %v33, %v313
    %v442 = vmul.f32 %v34, %v314
    %v443 = vmul.f32 %v35, %v315
    %v444 = vmul.f32 %v36, %v316
    %v445 = vmul.f32 %v37, %v317
    %v446 = vmul.f32 %v38, %v318
    %v447 = vmul.f32 %v39, %v319
    %v448 = vmul.f32 %v40, %v320
    %v449 = vmul.f32 %v41, %v321
    %v450 = vmul.f32 %v42, %v322
    %v451 = vmul.f32 %v43, %v323
    %v452 = vmul.f32 %v44, %v324
    %v453 = vmul.f32 %v45, %v325
    %v454 = vmul.f32 %v46, %v326
    %v455 = vmul.f32 %v47, %v327
    %v456 = vmul.f32 %v48, %v328
    %v457 = vmul.f32 %v49, %v329
    %v458 = vmul.f32 %v50, %v330
    %v459 = vmul.f32 %v51, %v331
    %v460 = vmul.f32 %v52, %v332
    %v461 = vmul.f32 %v53, %v333
    %v462 = vmul.f32 %v54, %v334
    %v463 = vmul.f32 %v55, %v335
    %v464 = vmul.f32 %v56, %v336
    %v465 = vmul.f32 %v57, %v337
    %v466 = vmul.f32 %v58, %v338
    %v467 = vmul.f32 %v59, %v339
    %v468 = vmul.f32 %v60, %v340
    %v469 = vmul.f32 %v61, %v341
    %v470 = vmul.f32 %v62, %v342
    %v471 = vmul.f32 %v63, %v343
    %v472 = vmul.f32 %v64, %v344
    %v473 = vmul.f32 %v65, %v345
    %v474 = vmul.f32 %v66, %v346
    %v475 = vmul.f32 %v67, %v347
    %v476 = vmul.f32 %v68, %v348
    %v477 = vmul.f32 %v69, %v349
    %v478 = vmul.f32 %v70, %v350
    %v479 = vmul.f32 %v71, %v351
    %v480 = vmul.f32 %v72, %v352
    %v481 = vmul.f32 %v73, %v353
    %v482 = vmul.f32 %v74, %v354
    %v483 = vmul.f32 %v75, %v355
    %v484 = vmul.f32 %v76, %v356
    %v485 = vmul.f32 %v77, %v357
    %v486 = vmul.f32 %v78, %v358
    %v487 = vmul.f32 %v79, %v359
    %v488 = vmul.f32 %v80, %v360
    %v489 = vmul.f32 %v81, %v361
    %v490 = vmul.f32 %v82, %v362
    %v491 = vmul.f32 %v83, %v363
    %v492 = vmul.f32 %v84, %v364
    %v493 = vmul.f32 %v85, %v365
    %v494 = vmul.f32 %v86, %v366
    %v495 = vmul.f32 %v87, %v367
    %v496 = vmul.f32 %v88, %v368
    %v497 = vmul.f32 %v89, %v369
    %v498 = vmul.f32 %v90, %v370
    %v499 = vmul.f32 %v91, %v371
    %v500 = vmul.f32 %v92, %v372
    %v501 = vmul.f32 %v93, %v373
    %v502 = vmul.f32 %v94, %v374
    %v503 = vmul.f32 %v95, %v375
    %v504 = vmul.f32 %v96, %v376
    %v505 = vmul.f32 %v97, %v377
    %v506 = vmul.f32 %v98, %v378
    %v507 = vmul.f32 %v99, %v379
    %v508 = vmul.f32 %v100, %v380
    %v509 = vmul.f32 %v101, %v381
    %v510 = vmul.f32 %v102, %v382
    %v511 = vmul.f32 %v103, %v383
    %v512 = vmul.f32 %v104, %v384
    %v513 = vmul.f32 %v105, %v385
    %v514 = vmul.f32 %v106, %v386
    %v515 = vmul.f32 %v107, %v387
    %v516 = vmul.f32 %v108, %v388
    %v517 = vmul.f32 %v109, %v389
    %v518 = vmul.f32 %v110, %v390
    %v519 = vmul.f32 %v111, %v391
    %v520 = vmul.f32 %v112, %v392
    %v521 = vmul.f32 %v113, %v393
    %v522 = vmul.f32 %v114, %v394
    %v523 = vmul.f32 %v115, %v395
    %v524 = vmul.f32 %v116, %v396
    %v525 = vmul.f32 %v117, %v397
    %v526 = vmul.f32 %v118, %v398
    %v527 = vmul.f32 %v119, %v399
    %v528 = vmul.f32 %v120, %v400
    %v529 = vmul.f32 %v121, %v401
    %v530 = vmul.f32 %v122, %v402
    %v531 = vmul.f32 %v123, %v403
    %v532 = vmul.f32 %v124, %v404
    %v533 = vmul.f32 %v125, %v405
    %v534 = vmul.f32 %v126, %v406
    %v535 = vmul.f32 %v127, %v407
    %v536 = vmul.f32 %v128, %v408
    %v537 = vmul.f32 %v129, %v409
    %v538 = vmul.f32 %v130, %v410
    %v539 = vmul.f32 %v131, %v411
    %v540 = vmul.f32 %v132, %v412
    %v541 = vmul.f32 %v133, %v413
    %v542 = vmul.f32 %v134, %v414
    %v543 = vmul.f32 %v135, %v415
    %v544 = vmul.f32 %v136, %v416
    %v545 = vmul.f32 %v137, %v417
    %v546 = vmul.f32 %v138, %v418
    %v547 = vmul.f32 %v139, %v419
    %v548 = vmul.f32 %v140, %v420
    %v549 = vmul.f32 %v141, %v421
    %v550 = vmul.f32 %v142, %v422
    %v551 = vmul.f32 %v143, %v423
    %v552 = vmul.f32 %v144, %v424
    %v553 = vmul.f32 %v145, %v425
    %v554 = vmul.f32 %v146, %v426
    %v555 = vmul.f32 %v147, %v427
    %v556 = vmul.f32 %v148, %v428
    %v557 = vmul.f32 %v149, %v429
    %v558 = vmul.f32 %v150, %v430
    %v559 = vmul.f32 %v151, %v431
    %v560 = vmul.f32 %v152, %v432
    %v561 = vmul.f32 %v153, %v433
    %v562 = vmul.f32 %v154, %v434
    %v563 = vmul.f32 %v155, %v435
    %v564 = vmul.f32 %v156, %v436
    %565 = vst [vmem:[#allocation5] sm:$0xff] %v437
    %566 = vst [vmem:[#allocation5 + $0x8] sm:$0xff] %v438
    %567 = vst [vmem:[#allocation5 + $0x10] sm:$0xff] %v439
    %568 = vst [vmem:[#allocation5 + $0x18] sm:$0xff] %v440
    %569 = vst [vmem:[#allocation5 + $0x20] sm:$0xff] %v441
    %570 = vst [vmem:[#allocation5 + $0x28] sm:$0xff] %v442
    %571 = vst [vmem:[#allocation5 + $0x30] sm:$0xff] %v443
    %572 = vst [vmem:[#allocation5 + $0x38] sm:$0xff] %v444
    %573 = vst [vmem:[#allocation5 + $0x40] sm:$0xff] %v445
    %574 = vst [vmem:[#allocation5 + $0x48] sm:$0xff] %v446
    %575 = vst [vmem:[#allocation5 + $0x50] sm:$0xff] %v447
    %576 = vst [vmem:[#allocation5 + $0x58] sm:$0xff] %v448
    %577 = vst [vmem:[#allocation5 + $0x60] sm:$0xff] %v449
    %578 = vst [vmem:[#allocation5 + $0x68] sm:$0xff] %v450
    %579 = vst [vmem:[#allocation5 + $0x70] sm:$0xff] %v451
    %580 = vst [vmem:[#allocation5 + $0x78] sm:$0xff] %v452
    %581 = vst [vmem:[#allocation5 + $0x80] sm:$0xff] %v453
    %582 = vst [vmem:[#allocation5 + $0x88] sm:$0xff] %v454
    %583 = vst [vmem:[#allocation5 + $0x90] sm:$0xff] %v455
    %584 = vst [vmem:[#allocation5 + $0x98] sm:$0xff] %v456
    %585 = vst [vmem:[#allocation5 + $0xa0] sm:$0xff] %v457
    %586 = vst [vmem:[#allocation5 + $0xa8] sm:$0xff] %v458
    %587 = vst [vmem:[#allocation5 + $0xb0] sm:$0xff] %v459
    %588 = vst [vmem:[#allocation5 + $0xb8] sm:$0xff] %v460
    %589 = vst [vmem:[#allocation5 + $0xc0] sm:$0xff] %v461
    %590 = vst [vmem:[#allocation5 + $0xc8] sm:$0xff] %v462
    %591 = vst [vmem:[#allocation5 + $0xd0] sm:$0xff] %v463
    %592 = vst [vmem:[#allocation5 + $0xd8] sm:$0xff] %v464
    %593 = vst [vmem:[#allocation5 + $0xe0] sm:$0xff] %v465
    %594 = vst [vmem:[#allocation5 + $0xe8] sm:$0xff] %v466
    %595 = vst [vmem:[#allocation5 + $0xf0] sm:$0xff] %v467
    %596 = vst [vmem:[#allocation5 + $0xf8] sm:$0xff] %v468
    %597 = vst [vmem:[#allocation5 + $0x100] sm:$0xff] %v469
    %598 = vst [vmem:[#allocation5 + $0x108] sm:$0xff] %v470
    %599 = vst [vmem:[#allocation5 + $0x110] sm:$0xff] %v471
    %600 = vst [vmem:[#allocation5 + $0x118] sm:$0xff] %v472
    %601 = vst [vmem:[#allocation5 + $0x120] sm:$0xff] %v473
    %602 = vst [vmem:[#allocation5 + $0x128] sm:$0xff] %v474
    %603 = vst [vmem:[#allocation5 + $0x130] sm:$0xff] %v475
    %604 = vst [vmem:[#allocation5 + $0x138] sm:$0xff] %v476
    %605 = vst [vmem:[#allocation5 + $0x140] sm:$0xff] %v477
    %606 = vst [vmem:[#allocation5 + $0x148] sm:$0xff] %v478
    %607 = vst [vmem:[#allocation5 + $0x150] sm:$0xff] %v479
    %608 = vst [vmem:[#allocation5 + $0x158] sm:$0xff] %v480
    %609 = vst [vmem:[#allocation5 + $0x160] sm:$0xff] %v481
    %610 = vst [vmem:[#allocation5 + $0x168] sm:$0xff] %v482
    %611 = vst [vmem:[#allocation5 + $0x170] sm:$0xff] %v483
    %612 = vst [vmem:[#allocation5 + $0x178] sm:$0xff] %v484
    %613 = vst [vmem:[#allocation5 + $0x180] sm:$0xff] %v485
    %614 = vst [vmem:[#allocation5 + $0x188] sm:$0xff] %v486
    %615 = vst [vmem:[#allocation5 + $0x190] sm:$0xff] %v487
    %616 = vst [vmem:[#allocation5 + $0x198] sm:$0xff] %v488
    %617 = vst [vmem:[#allocation5 + $0x1a0] sm:$0xff] %v489
    %618 = vst [vmem:[#allocation5 + $0x1a8] sm:$0xff] %v490
    %619 = vst [vmem:[#allocation5 + $0x1b0] sm:$0xff] %v491
    %620 = vst [vmem:[#allocation5 + $0x1b8] sm:$0xff] %v492
    %621 = vst [vmem:[#allocation5 + $0x1c0] sm:$0xff] %v493
    %622 = vst [vmem:[#allocation5 + $0x1c8] sm:$0xff] %v494
    %623 = vst [vmem:[#allocation5 + $0x1d0] sm:$0xff] %v495
    %624 = vst [vmem:[#allocation5 + $0x1d8] sm:$0xff] %v496
    %625 = vst [vmem:[#allocation5 + $0x1e0] sm:$0xff] %v497
    %626 = vst [vmem:[#allocation5 + $0x1e8] sm:$0xff] %v498
    %627 = vst [vmem:[#allocation5 + $0x1f0] sm:$0xff] %v499
    %628 = vst [vmem:[#allocation5 + $0x1f8] sm:$0xff] %v500
    %629 = vst [vmem:[#allocation5 + $0x200] sm:$0xff] %v501
    %630 = vst [vmem:[#allocation5 + $0x208] sm:$0xff] %v502
    %631 = vst [vmem:[#allocation5 + $0x210] sm:$0xff] %v503
    %632 = vst [vmem:[#allocation5 + $0x218] sm:$0xff] %v504
    %633 = vst [vmem:[#allocation5 + $0x220] sm:$0xff] %v505
    %634 = vst [vmem:[#allocation5 + $0x228] sm:$0xff] %v506
    %635 = vst [vmem:[#allocation5 + $0x230] sm:$0xff] %v507
    %636 = vst [vmem:[#allocation5 + $0x238] sm:$0xff] %v508
    %637 = vst [vmem:[#allocation5 + $0x240] sm:$0xff] %v509
    %638 = vst [vmem:[#allocation5 + $0x248] sm:$0xff] %v510
    %639 = vst [vmem:[#allocation5 + $0x250] sm:$0xff] %v511
    %640 = vst [vmem:[#allocation5 + $0x258] sm:$0xff] %v512
    %641 = vst [vmem:[#allocation5 + $0x260] sm:$0xff] %v513
    %642 = vst [vmem:[#allocation5 + $0x268] sm:$0xff] %v514
    %643 = vst [vmem:[#allocation5 + $0x270] sm:$0xff] %v515
    %644 = vst [vmem:[#allocation5 + $0x278] sm:$0xff] %v516
    %645 = vst [vmem:[#allocation5 + $0x280] sm:$0xff] %v517
    %646 = vst [vmem:[#allocation5 + $0x288] sm:$0xff] %v518
    %647 = vst [vmem:[#allocation5 + $0x290] sm:$0xff] %v519
    %648 = vst [vmem:[#allocation5 + $0x298] sm:$0xff] %v520
    %649 = vst [vmem:[#allocation5 + $0x2a0] sm:$0xff] %v521
    %650 = vst [vmem:[#allocation5 + $0x2a8] sm:$0xff] %v522
    %651 = vst [vmem:[#allocation5 + $0x2b0] sm:$0xff] %v523
    %652 = vst [vmem:[#allocation5 + $0x2b8] sm:$0xff] %v524
    %653 = vst [vmem:[#allocation5 + $0x2c0] sm:$0xff] %v525
    %654 = vst [vmem:[#allocation5 + $0x2c8] sm:$0xff] %v526
    %655 = vst [vmem:[#allocation5 + $0x2d0] sm:$0xff] %v527
    %656 = vst [vmem:[#allocation5 + $0x2d8] sm:$0xff] %v528
    %657 = vst [vmem:[#allocation5 + $0x2e0] sm:$0xff] %v529
    %658 = vst [vmem:[#allocation5 + $0x2e8] sm:$0xff] %v530
    %659 = vst [vmem:[#allocation5 + $0x2f0] sm:$0xff] %v531
    %660 = vst [vmem:[#allocation5 + $0x2f8] sm:$0xff] %v532
    %661 = vst [vmem:[#allocation5 + $0x300] sm:$0xff] %v533
    %662 = vst [vmem:[#allocation5 + $0x308] sm:$0xff] %v534
    %663 = vst [vmem:[#allocation5 + $0x310] sm:$0xff] %v535
    %664 = vst [vmem:[#allocation5 + $0x318] sm:$0xff] %v536
    %665 = vst [vmem:[#allocation5 + $0x320] sm:$0xff] %v537
    %666 = vst [vmem:[#allocation5 + $0x328] sm:$0xff] %v538
    %667 = vst [vmem:[#allocation5 + $0x330] sm:$0xff] %v539
    %668 = vst [vmem:[#allocation5 + $0x338] sm:$0xff] %v540
    %669 = vst [vmem:[#allocation5 + $0x340] sm:$0xff] %v541
    %670 = vst [vmem:[#allocation5 + $0x348] sm:$0xff] %v542
    %671 = vst [vmem:[#allocation5 + $0x350] sm:$0xff] %v543
    %672 = vst [vmem:[#allocation5 + $0x358] sm:$0xff] %v544
    %673 = vst [vmem:[#allocation5 + $0x360] sm:$0xff] %v545
    %674 = vst [vmem:[#allocation5 + $0x368] sm:$0xff] %v546
    %675 = vst [vmem:[#allocation5 + $0x370] sm:$0xff] %v547
    %676 = vst [vmem:[#allocation5 + $0x378] sm:$0xff] %v548
    %677 = vst [vmem:[#allocation5 + $0x380] sm:$0xff] %v549
    %678 = vst [vmem:[#allocation5 + $0x388] sm:$0xff] %v550
    %679 = vst [vmem:[#allocation5 + $0x390] sm:$0xff] %v551
    %680 = vst [vmem:[#allocation5 + $0x398] sm:$0xff] %v552
    %681 = vst [vmem:[#allocation5 + $0x3a0] sm:$0xff] %v553
    %682 = vst [vmem:[#allocation5 + $0x3a8] sm:$0xff] %v554
    %683 = vst [vmem:[#allocation5 + $0x3b0] sm:$0xff] %v555
    %684 = vst [vmem:[#allocation5 + $0x3b8] sm:$0xff] %v556
    %685 = vst [vmem:[#allocation5 + $0x3c0] sm:$0xff] %v557
    %686 = vst [vmem:[#allocation5 + $0x3c8] sm:$0xff] %v558
    %687 = vst [vmem:[#allocation5 + $0x3d0] sm:$0xff] %v559
    %688 = vst [vmem:[#allocation5 + $0x3d8] sm:$0xff] %v560
    %689 = vst [vmem:[#allocation5 + $0x3e0] sm:$0xff] %v561
    %690 = vst [vmem:[#allocation5 + $0x3e8] sm:$0xff] %v562
    %691 = vst [vmem:[#allocation5 + $0x3f0] sm:$0xff] %v563
    %692 = vst [vmem:[#allocation5 + $0x3f8] sm:$0xff] %v564
    // Predicated region
    $region18: #{tpu_custom_call.1} parent=1 // pred_check
      _
    $region19: #{tpu_custom_call.1} parent=1 // pred_check_branch
      %694 = sbr.rel (0) target = $region21
    $region20: #{tpu_custom_call.1} parent=1 // pred_region
      %s696 = ssub.s32 16384, 16384
      %697 = vsyncadd [#allocation4], %s696
      %s698 = sshll.u32 [#allocation5], 4
      %s699 = int_to_ptr.vmem [resolvable:$true] %s698
      %704 = dma.vmem_to_hbm [thread:$0]  %s699, 16384, %s3, [#allocation4], 256, 256, 16
    $region21: #{tpu_custom_call.1} parent=1 // pred_fallthru
      _
    // Predicated region
    $region22: #{tpu_custom_call.1} parent=1 // pred_check
      _
    $region23: #{tpu_custom_call.1} parent=1 // pred_check_branch
      %706 = sbr.rel (0) target = $region25
    $region24: #{tpu_custom_call.1} parent=1 // pred_region
      %707 = dma.done [#allocation4], 16384
    $region25: #{tpu_custom_call.1} parent=1 // pred_fallthru
      _
    %708 = vsyncpa [#allocation3], 1
    %709 = vsyncpa [#allocation4], 1

</llo_original>
